<compile_context>
chip_gen: v7x
topology: tpu7x:2x2x1
jax: 0.10.0
libtpu: 0.0.40
codegen_flags: <defaults>
</compile_context>

<pallas_src>
import math

import jax
import jax.numpy as jnp
from jax.experimental import pallas as pl
from jax.experimental.pallas import tpu as pltpu

CHEBY_ORDER = 5  # number of Chebyshev coefficients per cell (T_0 .. T_{K-1})


# ----------------------------- Pallas kernel -------------------------------
def _make_kernel(delays, W, K):
    """Fused delay + Chebyshev + sum-over-cells kernel (delays are static)."""
    assert K >= 3  # head-trimmed Clenshaw below assumes at least 3 coeffs

    def kernel(coef_ref, x_ref, o_ref):
        # coef_ref : SMEM (D, K) f32  -- scalar-prefetched per-cell coefficients
        # x_ref    : VMEM (tm, thw)   -- tile of the flattened (B*C, H*W) input
        # o_ref    : VMEM (tm, thw)   -- tile of the output
        x = x_ref[...].astype(jnp.float32)

        # Position of each lane inside its W-long row segment, computed on a
        # single sublane row (tile HW-offset is a multiple of W, so the local
        # index mod W equals the global index mod W).
        if any(d > 0 for d in delays):
            w_idx = jax.lax.broadcasted_iota(jnp.int32, (1, x.shape[1]), 1) % W

        acc = None
        for i, d in enumerate(delays):  # D is small & static: unroll in-kernel
            if d == 0:
                xd = x
            else:
                # XLU roll along the flattened H*W axis; lanes that wrapped or
                # crossed an H-row boundary all satisfy (lane % W) < d -> zero.
                xd = pltpu.roll(x, shift=d, axis=1)
                xd = jnp.where(w_idx < d, jnp.float32(0.0), xd)

            two_xd = xd + xd  # hoisted 2*x for the recurrence

            # Head-trimmed Clenshaw evaluation of sum_k c[i,k] * T_k(xd):
            #   b_{K-1} = c_{K-1}   (kept as an SMEM scalar)
            #   b_{K-2} = 2x*c_{K-1} + c_{K-2}
            b1 = two_xd * coef_ref[i, K - 1] + coef_ref[i, K - 2]
            b2 = coef_ref[i, K - 1]
            b2_is_scalar = True
            for k in range(K - 3, 0, -1):
                if b2_is_scalar:
                    # fold the scalar subtraction into the coefficient (free)
                    new_b1 = two_xd * b1 + (coef_ref[i, k] - b2)
                    b2_is_scalar = False
                else:
                    new_b1 = two_xd * b1 - b2 + coef_ref[i, k]
                b1, b2 = new_b1, b1
            term = xd * b1 - b2 + coef_ref[i, 0]

            acc = term if acc is None else acc + term

        o_ref[...] = acc.astype(o_ref.dtype)  # single lane-dense store per tile

    return kernel


# ------------------------------- glue / wrapper ----------------------------
def _ceil_to(n, m):
    return ((n + m - 1) // m) * m


def _vmem_capacity_bytes():
    """Physical VMEM capacity (conservative fallback if the query fails)."""
    try:
        return int(pltpu.get_tpu_info().vmem_capacity_bytes)
    except Exception:
        return 64 * 1024 * 1024  # assume the smallest (v7x-like) VMEM


def cheby_parallel_2d(x, delays, coeffs):
    """x: (B, C, H, W) NCHW; delays: python ints (0 <= d < W); coeffs: (D, K)."""
    B, C, H, W = x.shape
    D = len(delays)
    K = CHEBY_ORDER
    assert coeffs.shape == (D, K)
    assert all(0 <= int(d) < W for d in delays), "delays must satisfy 0 <= d < W"

    M, HW = B * C, H * W
    x2d = x.reshape(M, HW)  # free (contiguous) reshape; no extra HBM pass

    # Tile HW-width must be a multiple of 128 (lane-dense stores) AND of W
    # (W-segments never straddle a tile boundary; lane%W stays tile-local).
    lane_unit = (W * 128) // math.gcd(W, 128)  # lcm(W, 128)

    # Generation-aware budgets.
    vmem_cap = _vmem_capacity_bytes()
    big_vmem = vmem_cap >= 96 * 1024 * 1024        # v5e / v6e (128 MiB)
    tile_budget = (8 if big_vmem else 2) * 1024 * 1024  # bytes per f32 tile
    vmem_limit = int(max(32 * 1024 * 1024,
                         min(vmem_cap - 16 * 1024 * 1024, 96 * 1024 * 1024)))

    # Pick the HW tile width first, then as many rows as fit the tile budget.
    thw_cap_elems = 8192 if big_vmem else 4096
    thw_cap = max(lane_unit, (thw_cap_elems // lane_unit) * lane_unit)
    thw = min(_ceil_to(HW, lane_unit), thw_cap)
    tm_cap = max(8, min(256, ((tile_budget // (thw * 4)) // 8) * 8))
    tm = min(tm_cap, _ceil_to(M, 8))

    # v7x has 2 TensorCores: make sure there are >= 2 parallel tiles whenever
    # the problem can be split (cheap; harmless on 1-TC chips).
    if pl.cdiv(M, tm) * pl.cdiv(HW, thw) < 2:
        n_units = thw // lane_unit
        if n_units >= 2:
            thw = (n_units // 2) * lane_unit
        elif tm >= 16:
            tm = _ceil_to(tm // 2, 8)

    grid = (pl.cdiv(M, tm), pl.cdiv(HW, thw))

    kernel = _make_kernel(tuple(int(d) for d in delays), W, K)

    out2d = pl.pallas_call(
        kernel,
        out_shape=jax.ShapeDtypeStruct((M, HW), x.dtype),
        grid_spec=pltpu.PrefetchScalarGridSpec(
            num_scalar_prefetch=1,
            grid=grid,
            in_specs=[pl.BlockSpec((tm, thw), lambda i, j, coef: (i, j))],
            out_specs=pl.BlockSpec((tm, thw), lambda i, j, coef: (i, j)),
        ),
        compiler_params=pltpu.CompilerParams(
            # Purely spatial grid (D reduced in-kernel) -> both axes parallel,
            # so v7x can shard tiles across its two TensorCores.
            dimension_semantics=("parallel", "parallel"),
            vmem_limit_bytes=vmem_limit,
        ),
    )(coeffs.astype(jnp.float32), x2d)

    return out2d.reshape(B, C, H, W)


# ------------------------------ pure-JAX reference -------------------------
def delay_sig(x, d):
    """Zero-padded delay by d samples along the last axis (W)."""
    if d == 0:
        return x
    pad = jnp.zeros(x.shape[:-1] + (d,), x.dtype)
    return jnp.concatenate([pad, x[..., :-d]], axis=-1)


def cheby_eval_ref(x, c):
    """Direct T_k recurrence (independent of the Clenshaw form in the kernel)."""
    t_prev = jnp.ones_like(x)
    t_cur = x
    acc = c[0] * t_prev + c[1] * t_cur
    for k in range(2, CHEBY_ORDER):
        t_next = 2.0 * x * t_cur - t_prev
        acc = acc + c[k] * t_next
        t_prev, t_cur = t_cur, t_next
    return acc


def ref_forward(x, delays, coeffs):
    out = jnp.zeros_like(x)
    for i, d in enumerate(delays):
        out = out + cheby_eval_ref(delay_sig(x, d), coeffs[i])
    return out


# ----------------------------------- main -----------------------------------
if __name__ == "__main__":
    delays = [0, 2, 5]  # constructor argument of Cheby_parallel_2D
    D = len(delays)

    # Deterministic parameter init (one Cheby2D coefficient vector per cell).
    coeffs = 0.5 * jax.random.normal(
        jax.random.PRNGKey(42), (D, CHEBY_ORDER), dtype=jnp.float32
    )

    # Deterministic example input, NCHW.
    x = jax.random.normal(jax.random.PRNGKey(0), (2, 4, 16, 16), dtype=jnp.float32)

    out = cheby_parallel_2d(x, delays, coeffs)
    out = jax.block_until_ready(out)

    ref = ref_forward(x, delays, coeffs)
    assert out.shape == x.shape and out.dtype == x.dtype
    # Kernel uses Clenshaw; reference uses the direct recurrence -> small f32
    # reordering differences on large |x| samples, hence the tolerances.
    assert jnp.allclose(out, ref, atol=2e-3, rtol=1e-4), "mismatch vs reference"

    print("KERNEL_OK")
</pallas_src>

<mosaic_0001>
module attributes {stable_mosaic.version = 11 : i64} {
  func.func @kernel(%arg0: i32, %arg1: i32, %arg2: memref<3x5xf32, #tpu.memory_space<smem>>, %arg3: memref<8x128xf32, #tpu.memory_space<vmem>>, %arg4: memref<8x128xf32, #tpu.memory_space<vmem>>) attributes {dimension_semantics = [#tpu.dimension_semantics<parallel>, #tpu.dimension_semantics<parallel>], iteration_bounds = array<i64: 1, 2>, scalar_prefetch = 1 : i64, scratch_operands = 0 : i64, tpu.core_type = #tpu.core_type<tc>, window_params = [{transform_indices = @transform_0, window_bounds = array<i64: 8, 128>}, {transform_indices = @transform_1, window_bounds = array<i64: 8, 128>}]} {
    %c0 = arith.constant 0 : index
    %c0_0 = arith.constant 0 : index
    %0 = vector.load %arg3[%c0, %c0_0] : memref<8x128xf32, #tpu.memory_space<vmem>>, vector<8x128xf32>
    %1 = tpu.iota {dimensions = array<i32: 1>} : vector<1x128xi32>
    %c16_i32 = arith.constant 16 : i32
    %c0_i32 = arith.constant 0 : i32
    %2 = arith.cmpi eq, %c16_i32, %c0_i32 : i32
    %c1_i32 = arith.constant 1 : i32
    %3 = arith.select %2, %c1_i32, %c16_i32 : i32
    %4 = vector.broadcast %3 : i32 to vector<1x128xi32>
    %5 = arith.remsi %1, %4 : vector<1x128xi32>
    %c0_i32_1 = arith.constant 0 : i32
    %6 = vector.broadcast %c0_i32_1 : i32 to vector<1x128xi32>
    %7 = arith.cmpi ne, %5, %6 : vector<1x128xi32>
    %c0_i32_2 = arith.constant 0 : i32
    %8 = vector.broadcast %c0_i32_2 : i32 to vector<1x128xi32>
    %9 = arith.cmpi slt, %5, %8 : vector<1x128xi32>
    %c0_i32_3 = arith.constant 0 : i32
    %10 = arith.cmpi slt, %3, %c0_i32_3 : i32
    %11 = vector.broadcast %10 : i1 to vector<1x128xi1>
    %12 = vector.broadcast %11 : vector<1x128xi1> to vector<1x128xi1>
    %13 = arith.xori %9, %12 : vector<1x128xi1>
    %14 = arith.andi %13, %7 : vector<1x128xi1>
    %15 = vector.broadcast %3 : i32 to vector<1x128xi32>
    %16 = arith.addi %5, %15 : vector<1x128xi32>
    %17 = arith.select %14, %16, %5 : vector<1x128xi1>, vector<1x128xi32>
    %18 = arith.addf %0, %0 : vector<8x128xf32>
    %c0_4 = arith.constant 0 : index
    %c4 = arith.constant 4 : index
    %19 = memref.load %arg2[%c0_4, %c4] : memref<3x5xf32, #tpu.memory_space<smem>>
    %20 = vector.broadcast %19 : f32 to vector<8x128xf32>
    %21 = arith.mulf %18, %20 : vector<8x128xf32>
    %c0_5 = arith.constant 0 : index
    %c3 = arith.constant 3 : index
    %22 = memref.load %arg2[%c0_5, %c3] : memref<3x5xf32, #tpu.memory_space<smem>>
    %23 = vector.broadcast %22 : f32 to vector<8x128xf32>
    %24 = arith.addf %21, %23 : vector<8x128xf32>
    %c0_6 = arith.constant 0 : index
    %c4_7 = arith.constant 4 : index
    %25 = memref.load %arg2[%c0_6, %c4_7] : memref<3x5xf32, #tpu.memory_space<smem>>
    %26 = arith.mulf %18, %24 : vector<8x128xf32>
    %c0_8 = arith.constant 0 : index
    %c2 = arith.constant 2 : index
    %27 = memref.load %arg2[%c0_8, %c2] : memref<3x5xf32, #tpu.memory_space<smem>>
    %28 = arith.subf %27, %25 : f32
    %29 = vector.broadcast %28 : f32 to vector<8x128xf32>
    %30 = arith.addf %26, %29 : vector<8x128xf32>
    %31 = arith.mulf %18, %30 : vector<8x128xf32>
    %32 = arith.subf %31, %24 : vector<8x128xf32>
    %c0_9 = arith.constant 0 : index
    %c1 = arith.constant 1 : index
    %33 = memref.load %arg2[%c0_9, %c1] : memref<3x5xf32, #tpu.memory_space<smem>>
    %34 = vector.broadcast %33 : f32 to vector<8x128xf32>
    %35 = arith.addf %32, %34 : vector<8x128xf32>
    %36 = arith.mulf %0, %35 : vector<8x128xf32>
    %37 = arith.subf %36, %30 : vector<8x128xf32>
    %c0_10 = arith.constant 0 : index
    %c0_11 = arith.constant 0 : index
    %38 = memref.load %arg2[%c0_10, %c0_11] : memref<3x5xf32, #tpu.memory_space<smem>>
    %39 = vector.broadcast %38 : f32 to vector<8x128xf32>
    %40 = arith.addf %37, %39 : vector<8x128xf32>
    %c2_i32 = arith.constant 2 : i32
    %41 = tpu.dynamic_rotate %0 by %c2_i32 dim 1 : vector<8x128xf32>, i32 -> vector<8x128xf32>
    %c2_i32_12 = arith.constant 2 : i32
    %42 = vector.broadcast %c2_i32_12 : i32 to vector<1x128xi32>
    %43 = arith.cmpi slt, %17, %42 : vector<1x128xi32>
    %cst = arith.constant 0.000000e+00 : f32
    %44 = vector.shape_cast %43 : vector<1x128xi1> to vector<1x128xi1>
    %45 = vector.broadcast %44 : vector<1x128xi1> to vector<8x128xi1>
    %46 = vector.broadcast %cst : f32 to vector<8x128xf32>
    %47 = arith.select %45, %46, %41 : vector<8x128xi1>, vector<8x128xf32>
    %48 = arith.addf %47, %47 : vector<8x128xf32>
    %c1_13 = arith.constant 1 : index
    %c4_14 = arith.constant 4 : index
    %49 = memref.load %arg2[%c1_13, %c4_14] : memref<3x5xf32, #tpu.memory_space<smem>>
    %50 = vector.broadcast %49 : f32 to vector<8x128xf32>
    %51 = arith.mulf %48, %50 : vector<8x128xf32>
    %c1_15 = arith.constant 1 : index
    %c3_16 = arith.constant 3 : index
    %52 = memref.load %arg2[%c1_15, %c3_16] : memref<3x5xf32, #tpu.memory_space<smem>>
    %53 = vector.broadcast %52 : f32 to vector<8x128xf32>
    %54 = arith.addf %51, %53 : vector<8x128xf32>
    %c1_17 = arith.constant 1 : index
    %c4_18 = arith.constant 4 : index
    %55 = memref.load %arg2[%c1_17, %c4_18] : memref<3x5xf32, #tpu.memory_space<smem>>
    %56 = arith.mulf %48, %54 : vector<8x128xf32>
    %c1_19 = arith.constant 1 : index
    %c2_20 = arith.constant 2 : index
    %57 = memref.load %arg2[%c1_19, %c2_20] : memref<3x5xf32, #tpu.memory_space<smem>>
    %58 = arith.subf %57, %55 : f32
    %59 = vector.broadcast %58 : f32 to vector<8x128xf32>
    %60 = arith.addf %56, %59 : vector<8x128xf32>
    %61 = arith.mulf %48, %60 : vector<8x128xf32>
    %62 = arith.subf %61, %54 : vector<8x128xf32>
    %c1_21 = arith.constant 1 : index
    %c1_22 = arith.constant 1 : index
    %63 = memref.load %arg2[%c1_21, %c1_22] : memref<3x5xf32, #tpu.memory_space<smem>>
    %64 = vector.broadcast %63 : f32 to vector<8x128xf32>
    %65 = arith.addf %62, %64 : vector<8x128xf32>
    %66 = arith.mulf %47, %65 : vector<8x128xf32>
    %67 = arith.subf %66, %60 : vector<8x128xf32>
    %c1_23 = arith.constant 1 : index
    %c0_24 = arith.constant 0 : index
    %68 = memref.load %arg2[%c1_23, %c0_24] : memref<3x5xf32, #tpu.memory_space<smem>>
    %69 = vector.broadcast %68 : f32 to vector<8x128xf32>
    %70 = arith.addf %67, %69 : vector<8x128xf32>
    %71 = arith.addf %40, %70 : vector<8x128xf32>
    %c5_i32 = arith.constant 5 : i32
    %72 = tpu.dynamic_rotate %0 by %c5_i32 dim 1 : vector<8x128xf32>, i32 -> vector<8x128xf32>
    %c5_i32_25 = arith.constant 5 : i32
    %73 = vector.broadcast %c5_i32_25 : i32 to vector<1x128xi32>
    %74 = arith.cmpi slt, %17, %73 : vector<1x128xi32>
    %cst_26 = arith.constant 0.000000e+00 : f32
    %75 = vector.shape_cast %74 : vector<1x128xi1> to vector<1x128xi1>
    %76 = vector.broadcast %75 : vector<1x128xi1> to vector<8x128xi1>
    %77 = vector.broadcast %cst_26 : f32 to vector<8x128xf32>
    %78 = arith.select %76, %77, %72 : vector<8x128xi1>, vector<8x128xf32>
    %79 = arith.addf %78, %78 : vector<8x128xf32>
    %c2_27 = arith.constant 2 : index
    %c4_28 = arith.constant 4 : index
    %80 = memref.load %arg2[%c2_27, %c4_28] : memref<3x5xf32, #tpu.memory_space<smem>>
    %81 = vector.broadcast %80 : f32 to vector<8x128xf32>
    %82 = arith.mulf %79, %81 : vector<8x128xf32>
    %c2_29 = arith.constant 2 : index
    %c3_30 = arith.constant 3 : index
    %83 = memref.load %arg2[%c2_29, %c3_30] : memref<3x5xf32, #tpu.memory_space<smem>>
    %84 = vector.broadcast %83 : f32 to vector<8x128xf32>
    %85 = arith.addf %82, %84 : vector<8x128xf32>
    %c2_31 = arith.constant 2 : index
    %c4_32 = arith.constant 4 : index
    %86 = memref.load %arg2[%c2_31, %c4_32] : memref<3x5xf32, #tpu.memory_space<smem>>
    %87 = arith.mulf %79, %85 : vector<8x128xf32>
    %c2_33 = arith.constant 2 : index
    %c2_34 = arith.constant 2 : index
    %88 = memref.load %arg2[%c2_33, %c2_34] : memref<3x5xf32, #tpu.memory_space<smem>>
    %89 = arith.subf %88, %86 : f32
    %90 = vector.broadcast %89 : f32 to vector<8x128xf32>
    %91 = arith.addf %87, %90 : vector<8x128xf32>
    %92 = arith.mulf %79, %91 : vector<8x128xf32>
    %93 = arith.subf %92, %85 : vector<8x128xf32>
    %c2_35 = arith.constant 2 : index
    %c1_36 = arith.constant 1 : index
    %94 = memref.load %arg2[%c2_35, %c1_36] : memref<3x5xf32, #tpu.memory_space<smem>>
    %95 = vector.broadcast %94 : f32 to vector<8x128xf32>
    %96 = arith.addf %93, %95 : vector<8x128xf32>
    %97 = arith.mulf %78, %96 : vector<8x128xf32>
    %98 = arith.subf %97, %91 : vector<8x128xf32>
    %c2_37 = arith.constant 2 : index
    %c0_38 = arith.constant 0 : index
    %99 = memref.load %arg2[%c2_37, %c0_38] : memref<3x5xf32, #tpu.memory_space<smem>>
    %100 = vector.broadcast %99 : f32 to vector<8x128xf32>
    %101 = arith.addf %98, %100 : vector<8x128xf32>
    %102 = arith.addf %71, %101 : vector<8x128xf32>
    %c0_39 = arith.constant 0 : index
    %c0_40 = arith.constant 0 : index
    %103 = vector.load %arg4[%c0_39, %c0_40] : memref<8x128xf32, #tpu.memory_space<vmem>>, vector<8x128xf32>
    tpu.vector_store %arg4[%c0_39, %c0_40], %102 {strides = array<i32>} : memref<8x128xf32, #tpu.memory_space<vmem>>, vector<8x128xf32>,
    return
  }
  func.func @transform_0(%arg0: i32, %arg1: i32, %arg2: memref<3x5xf32, #tpu.memory_space<smem>>) -> (i32, i32) {
    %c0_i32 = arith.constant 0 : i32
    return %arg0, %arg1 : i32, i32
  }
  func.func @transform_1(%arg0: i32, %arg1: i32, %arg2: memref<3x5xf32, #tpu.memory_space<smem>>) -> (i32, i32) {
    %c0_i32 = arith.constant 0 : i32
    return %arg0, %arg1 : i32, i32
  }
}

</mosaic_0001>

<llo_original>
// kernel: tpu_custom_call.1
$region0: #{tpu_custom_call.1}
  #allocation0 [shape = 'u32[]', space=smem, size = 0x4, offset = 0x4, fixed_abs, tag = 'smem constant byte address 0x4 - core index']
  #allocation1 [shape = 'u32[144,128]{1,0:T(1,128)}', space=vmem, size = 0x12000, scoped, tag = 'internal scratch']
  #allocation2 [shape = 's32[1]{0}', space=sflag, size = 0x4, scoped, tag = 'scoped memory for tpu_custom_call.1']
  #allocation3 [shape = 'u8[2048]{0}', space=smem, size = 0x800, scoped, tag = 'prefetched SMEM operand 0']
  %s0 = inlined_call_operand.hbm [shape: f32[3,5], index: 0, kind: input, shape index: {}]
  %s1 = inlined_call_operand.hbm [shape: f32[8,256], index: 1, kind: input, shape index: {}]
  %s2 = inlined_call_operand.hbm [shape: f32[8,256], index: 2, kind: output, shape index: {}]
  %s3 = sld [smem:[#allocation0]]
  $region41: #{tpu_custom_call.1} parent=0
    _
  %s5 = ssub.s32 1, %s3
  %s6 = scalar_select 0, %s5, %s3
  %8 = dma.hbm_to_smem %s0, 64, [#allocation3], [#allocation2]
  %9 = dma.done [#allocation2], 64
  %10 = sfence
  $region1: #{tpu_custom_call.1} parent=0
    #allocation4 [shape = 'u8[8192]{0}', space=vmem, size = 0x2000, scoped, tag = 'input window, operand 1']
    #allocation5 [shape = 's32[2]{0}', space=sflag, size = 0x8, scoped, tag = 'scoped memory for tpu_custom_call.1']
    #allocation6 [shape = 's32[2]{0}', space=sflag, size = 0x8, scoped, tag = 'scoped memory for tpu_custom_call.1']
    #allocation7 [shape = 'u8[8192]{0}', space=vmem, size = 0x2000, scoped, tag = 'output window, operand 0']
    %11 = vsyncpa [#allocation5], 0
    %s12 = scalar_lea.sflag [#allocation5], 1
    %13 = vsyncpa %s12, 0
    %14 = vsyncpa [#allocation6], 0
    %s15 = scalar_lea.sflag [#allocation6], 1
    %16 = vsyncpa %s15, 0
    loop: start=0, step=1, limit=4
    $region2: #{tpu_custom_call.1} parent=1 // loop_pre_header
      _
    $region3: #{tpu_custom_call.1} parent=1 // loop_header
      %s18 = sphi 0, %s22
      %p19 = scmp.ge.s32.totalorder %s18, 4
      %s25 = sphi 0, %s37
      %s26 = sphi 0, %s33
      %s27 = sphi 0, %s25
      %s28 = sphi 0, %s26
      %s29 = sphi 0, %s27
      %s30 = sphi 0, %s28
      %s42 = sphi 0, %s44
      %s45 = sphi 0, %s42
      %s46 = sphi 0, %s45
      %s62 = sphi 0, %s46
      %s70 = sphi 0, %s72
      %s73 = sphi 0, %s70
      %s74 = sphi 0, %s73
      %s90 = sphi 0, %s74
    $region4: #{tpu_custom_call.1} parent=1 // loop_header_branch
      %21 = sbr.rel (%p19) target = $region8
    $region5: #{tpu_custom_call.1} parent=1 // loop_body
      %s23 = ssub.s32 %s18, 1
      %s24 = ssub.s32 %s18, 2
      %s31 = sadd.s32 1, %s26
      %p32 = scmp.ge.s32.totalorder %s31, 2
      %s33 = scalar_select %p32, 0, %s31
      %s34 = sadd.s32 1, %s25
      %s35 = scalar_select %p32, %s34, %s25
      %p36 = scmp.ge.s32.totalorder %s35, 1
      %s37 = scalar_select %p36, 0, %s35
      %s38 = ssub.s32 %s25, %s37
      %s39 = ssub.s32 %s26, %s33
      %s40 = sor.u32 %s38, %s39
      %p41 = scmp.eq.s32.totalorder %s40, 0
      %s43 = sadd.s32 %s42, 1
      %s44 = scalar_select %p41, %s42, %s43
      %p47 = pneg %p41
      %p48 = scmp.eq.s32.totalorder %s18, 1
      %p49 = por %p47, %p48
      %p50 = scmp.ne.s32.totalorder %s42, %s45
      %p51 = scmp.eq.s32.totalorder %s18, 0
      %p52 = por %p50, %p51
      %p53 = scmp.ne.s32.totalorder %s42, %s45
      %p54 = scmp.eq.s32.totalorder %s23, 1
      %p55 = por %p53, %p54
      %p56 = scmp.ne.s32.totalorder %s45, %s46
      %p57 = scmp.eq.s32.totalorder %s23, 0
      %p58 = por %p56, %p57
      %p59 = scmp.ne.s32.totalorder %s45, %s46
      %p60 = scmp.eq.s32.totalorder %s24, 1
      %p61 = por %p59, %p60
      %p63 = scmp.ne.s32.totalorder %s46, %s62
      %p64 = scmp.eq.s32.totalorder %s24, 0
      %p65 = por %p63, %p64
      %s66 = ssub.s32 %s25, %s37
      %s67 = ssub.s32 %s26, %s33
      %s68 = sor.u32 %s66, %s67
      %p69 = scmp.eq.s32.totalorder %s68, 0
      %s71 = sadd.s32 %s70, 1
      %s72 = scalar_select %p69, %s70, %s71
      %p75 = pneg %p69
      %p76 = scmp.eq.s32.totalorder %s18, 1
      %p77 = por %p75, %p76
      %p78 = scmp.ne.s32.totalorder %s70, %s73
      %p79 = scmp.eq.s32.totalorder %s18, 0
      %p80 = por %p78, %p79
      %p81 = scmp.ne.s32.totalorder %s70, %s73
      %p82 = scmp.eq.s32.totalorder %s23, 1
      %p83 = por %p81, %p82
      %p84 = scmp.ne.s32.totalorder %s73, %s74
      %p85 = scmp.eq.s32.totalorder %s23, 0
      %p86 = por %p84, %p85
      %p87 = scmp.ne.s32.totalorder %s73, %s74
      %p88 = scmp.eq.s32.totalorder %s24, 1
      %p89 = por %p87, %p88
      %p91 = scmp.ne.s32.totalorder %s74, %s90
      %p92 = scmp.eq.s32.totalorder %s24, 0
      %p93 = por %p91, %p92
      %p94 = scmp.le.s32.totalorder 1, %s18
      %p95 = scmp.lt.s32.totalorder %s18, 3
      %p96 = pnand %p94, %p95
      %p97 = pneg %p96
      // Predicated region
      $region9: #{tpu_custom_call.1} parent=5 // pred_check
        _
      $region10: #{tpu_custom_call.1} parent=5 // pred_check_branch
        %99 = sbr.rel (%p96) target = $region12
      $region11: #{tpu_custom_call.1} parent=5 // pred_region
        %s100 = ssub.s32 %s18, 1
      $region12: #{tpu_custom_call.1} parent=5 // pred_fallthru
        _
      %p101 = scmp.lt.s32.totalorder %s18, 2
      // Predicated region
      $region13: #{tpu_custom_call.1} parent=5 // pred_check
        %p102 = pneg %p101
      $region14: #{tpu_custom_call.1} parent=5 // pred_check_branch
        %104 = sbr.rel (%p102) target = $region16
      $region15: #{tpu_custom_call.1} parent=5 // pred_region
        // Predicated region
        $region17: #{tpu_custom_call.1} parent=15 // pred_check
          %p105 = pneg %p52
        $region18: #{tpu_custom_call.1} parent=15 // pred_check_branch
          %107 = sbr.rel (%p105) target = $region20
        $region19: #{tpu_custom_call.1} parent=15 // pred_region
          %s108 = sand.u32 %s42, 1
          %s109 = scalar_lea.sflag [#allocation5], %s108
          %s110 = sand.u32 %s42, 1
          %s111 = smul.addr %s110, 8
          %s112 = scalar_lea.vmem [#allocation4], %s111
          %s114 = ssub.s32 128, 128
          %115 = vsyncadd %s109, %s114
          %s116 = smul.addr %s25, 2
          %s117 = sadd.s32 %s26, %s116
          %s118 = smul.addr %s117, 128
          %s119 = scalar_lea.hbm %s1, %s118
          %s121 = sshll.u32 %s112, 4
          %s122 = int_to_ptr.vmem [resolvable:$true] %s121
          %124 = dma.hbm_to_vmem [thread:$0]  %s119, 128, %s122, %s109
        $region20: #{tpu_custom_call.1} parent=15 // pred_fallthru
          _
      $region16: #{tpu_custom_call.1} parent=5 // pred_fallthru
        _
      %p125 = scmp.le.s32.totalorder 1, %s18
      %p126 = scmp.lt.s32.totalorder %s18, 3
      %p127 = pnand %p125, %p126
      %p128 = pneg %p127
      // Predicated region
      $region21: #{tpu_custom_call.1} parent=5 // pred_check
        _
      $region22: #{tpu_custom_call.1} parent=5 // pred_check_branch
        %130 = sbr.rel (%p127) target = $region24
      $region23: #{tpu_custom_call.1} parent=5 // pred_region
        %s131 = ssub.s32 %s18, 1
        %s132 = sand.u32 %s45, 1
        %s133 = scalar_lea.sflag [#allocation5], %s132
        %s134 = sand.u32 %s45, 1
        %s135 = smul.addr %s134, 8
        %s136 = scalar_lea.vmem [#allocation4], %s135
        // Predicated region
        $region25: #{tpu_custom_call.1} parent=23 // pred_check
          %p137 = pneg %p58
        $region26: #{tpu_custom_call.1} parent=23 // pred_check_branch
          %139 = sbr.rel (%p137) target = $region28
        $region27: #{tpu_custom_call.1} parent=23 // pred_region
          %140 = dma.done %s133, 128
        $region28: #{tpu_custom_call.1} parent=23 // pred_fallthru
          _
        %s141 = sand.u32 %s45, 1
        %s142 = scalar_lea.sflag [#allocation5], %s141
        %s143 = sand.u32 %s45, 1
        %s144 = smul.addr %s143, 8
        %s145 = scalar_lea.vmem [#allocation4], %s144
        %p146 = pneg %p58
        %p147 = pneg %p55
        %p148 = pneg %p86
        %p149 = pneg %p83
        %s150 = sand.u32 %s73, 1
        %s151 = scalar_lea.sflag [#allocation6], %s150
        %s152 = sand.u32 %s73, 1
        %s153 = smul.addr %s152, 8
        %s154 = scalar_lea.vmem [#allocation7], %s153
        %v155 = vld [vmem:[%s136] sm:$0xff]
        %v156 = vlaneseq
        %v157 = vand.u32 %v156, 127
        %vm158 = vcmp.lt.s32.totalorder %v157, 0
        %v159 = vsub.s32 0, %v157
        %v160 = vsel %vm158, %v159, %v157
        %v161 = vshrl.u32 %v160, 4
        %v162 = vand.u32 %v160, 15
        %v163 = vsub.s32 0, %v162
        %v164 = vsel %vm158, %v163, %v162
        %vm165 = vcmp.ne.s32.totalorder %v164, 0
        %vm166 = vcmp.lt.s32.totalorder %v164, 0
        %vm167 = vmand %vm166, %vm165
        %v168 = vadd.s32 %v164, 16
        %v169 = vsel %vm167, %v168, %v164
        %v170 = vadd.f32 %v155, %v155
        %s171 = sld [smem:[#allocation3 + $0x4]]
        %v172 = vstv %s171
        %v173 = vmul.f32 %v170, %v172
        %s174 = sld [smem:[#allocation3 + $0x3]]
        %v175 = vstv %s174
        %v176 = vadd.f32 %v173, %v175
        %v177 = vmul.f32 %v170, %v176
        %s178 = sld [smem:[#allocation3 + $0x2]]
        %s179 = ssub.f32 %s178, %s171
        %v180 = vstv %s179
        %v181 = vadd.f32 %v177, %v180
        %v182 = vmul.f32 %v170, %v181
        %v183 = vsub.f32 %v182, %v176
        %s184 = sld [smem:[#allocation3 + $0x1]]
        %v185 = vstv %s184
        %v186 = vadd.f32 %v183, %v185
        %v187 = vmul.f32 %v155, %v186
        %v188 = vsub.f32 %v187, %v181
        %s189 = sld [smem:[#allocation3]]
        %v190 = vstv %s189
        %v191 = vadd.f32 %v188, %v190
        %192 = vrot.lane.b32.xlu0 %v155, 2
        %v193 = vpop.permute.xlu0 %192
        %vm194 = vcmp.lt.s32.totalorder %v169, 2
        %v195 = vsel %vm194, 1, 0
        %vm196 = vcmp.eq.s32.totalorder %v195, 1
        %v197 = vsel %vm196, 0.0, %v193
        %v198 = vadd.f32 %v197, %v197
        %s199 = sld [smem:[#allocation3 + $0x84]]
        %v200 = vstv %s199
        %v201 = vmul.f32 %v198, %v200
        %s202 = sld [smem:[#allocation3 + $0x83]]
        %v203 = vstv %s202
        %v204 = vadd.f32 %v201, %v203
        %v205 = vmul.f32 %v198, %v204
        %s206 = sld [smem:[#allocation3 + $0x82]]
        %s207 = ssub.f32 %s206, %s199
        %v208 = vstv %s207
        %v209 = vadd.f32 %v205, %v208
        %v210 = vmul.f32 %v198, %v209
        %v211 = vsub.f32 %v210, %v204
        %s212 = sld [smem:[#allocation3 + $0x81]]
        %v213 = vstv %s212
        %v214 = vadd.f32 %v211, %v213
        %v215 = vmul.f32 %v197, %v214
        %v216 = vsub.f32 %v215, %v209
        %s217 = sld [smem:[#allocation3 + $0x80]]
        %v218 = vstv %s217
        %v219 = vadd.f32 %v216, %v218
        %v220 = vadd.f32 %v191, %v219
        %221 = vrot.lane.b32.xlu0 %v155, 5
        %v222 = vpop.permute.xlu0 %221
        %vm223 = vcmp.lt.s32.totalorder %v169, 5
        %v224 = vsel %vm223, 1, 0
        %vm225 = vcmp.eq.s32.totalorder %v224, 1
        %v226 = vsel %vm225, 0.0, %v222
        %v227 = vadd.f32 %v226, %v226
        %s228 = sld [smem:[#allocation3 + $0x104]]
        %v229 = vstv %s228
        %v230 = vmul.f32 %v227, %v229
        %s231 = sld [smem:[#allocation3 + $0x103]]
        %v232 = vstv %s231
        %v233 = vadd.f32 %v230, %v232
        %v234 = vmul.f32 %v227, %v233
        %s235 = sld [smem:[#allocation3 + $0x102]]
        %s236 = ssub.f32 %s235, %s228
        %v237 = vstv %s236
        %v238 = vadd.f32 %v234, %v237
        %v239 = vmul.f32 %v227, %v238
        %v240 = vsub.f32 %v239, %v233
        %s241 = sld [smem:[#allocation3 + $0x101]]
        %v242 = vstv %s241
        %v243 = vadd.f32 %v240, %v242
        %v244 = vmul.f32 %v226, %v243
        %v245 = vsub.f32 %v244, %v238
        %s246 = sld [smem:[#allocation3 + $0x100]]
        %v247 = vstv %s246
        %v248 = vadd.f32 %v245, %v247
        %v249 = vadd.f32 %v220, %v248
        %250 = vst [vmem:[%s154] sm:$0xff] %v249
        %s251 = sand.u32 %s73, 1
        %s252 = scalar_lea.sflag [#allocation6], %s251
        %s253 = sand.u32 %s73, 1
        %s254 = smul.addr %s253, 8
        %s255 = scalar_lea.vmem [#allocation7], %s254
        // Predicated region
        $region29: #{tpu_custom_call.1} parent=23 // pred_check
          %p256 = pneg %p83
        $region30: #{tpu_custom_call.1} parent=23 // pred_check_branch
          %258 = sbr.rel (%p256) target = $region32
        $region31: #{tpu_custom_call.1} parent=23 // pred_region
          %s260 = ssub.s32 128, 128
          %261 = vsyncadd %s252, %s260
          %s262 = smul.addr %s27, 2
          %s263 = sadd.s32 %s28, %s262
          %s264 = smul.addr %s263, 128
          %s265 = scalar_lea.hbm %s2, %s264
          %s267 = sshll.u32 %s255, 4
          %s268 = int_to_ptr.vmem [resolvable:$true] %s267
          %270 = dma.vmem_to_hbm [thread:$0]  %s268, 128, %s265, %s252
        $region32: #{tpu_custom_call.1} parent=23 // pred_fallthru
          _
      $region24: #{tpu_custom_call.1} parent=5 // pred_fallthru
        _
      %p271 = scmp.le.s32.totalorder 2, %s18
      // Predicated region
      $region33: #{tpu_custom_call.1} parent=5 // pred_check
        %p272 = pneg %p271
      $region34: #{tpu_custom_call.1} parent=5 // pred_check_branch
        %274 = sbr.rel (%p272) target = $region36
      $region35: #{tpu_custom_call.1} parent=5 // pred_region
        %s275 = ssub.s32 %s18, 2
        // Predicated region
        $region37: #{tpu_custom_call.1} parent=35 // pred_check
          %p276 = pneg %p89
        $region38: #{tpu_custom_call.1} parent=35 // pred_check_branch
          %278 = sbr.rel (%p276) target = $region40
        $region39: #{tpu_custom_call.1} parent=35 // pred_region
          %s279 = sand.u32 %s74, 1
          %s280 = scalar_lea.sflag [#allocation6], %s279
          %s281 = sand.u32 %s74, 1
          %s282 = smul.addr %s281, 8
          %s283 = scalar_lea.vmem [#allocation7], %s282
          %284 = dma.done %s280, 128
        $region40: #{tpu_custom_call.1} parent=35 // pred_fallthru
          _
      $region36: #{tpu_custom_call.1} parent=5 // pred_fallthru
        _
    $region6: #{tpu_custom_call.1} parent=1 // loop_footer
      %s22 = sadd.s32 1, %s18
    $region7: #{tpu_custom_call.1} parent=1 // loop_footer_branch
      %17 = sbr.rel target = $region3
    $region8: #{tpu_custom_call.1} parent=1 // loop_exit
      _
    %285 = vsyncpa [#allocation5], 1
    %s286 = scalar_lea.sflag [#allocation5], 1
    %287 = vsyncpa %s286, 1
    %288 = vsyncpa [#allocation6], 1
    %s289 = scalar_lea.sflag [#allocation6], 1
    %290 = vsyncpa %s289, 1

</llo_original>
